<compile_context>
chip_gen: v6e
topology: v6e:2x2x1
jax: 0.10.0
libtpu: 0.0.40
codegen_flags: <defaults>
</compile_context>

<pallas_src>
import functools
import math

import jax
import jax.numpy as jnp
from jax import lax
from jax.experimental import pallas as pl
from jax.experimental.pallas import tpu as pltpu

_VMEM_LIMIT = 64 * 1024 * 1024


def _pick_tile(n, target):
    """Largest multiple of 8 that divides n and is <= target; else n (full dim)."""
    if n <= target:
        return n
    t = (target // 8) * 8
    while t >= 8:
        if n % t == 0:
            return t
        t -= 8
    return n


# ----------------------- fused Q/K/V projection + head split -----------------------
def _qkv_proj_kernel(x_ref, w_ref, b_ref, o_ref, *, num_heads, head_dim):
    # x_ref: [1, 1, tm, D]   w_ref: [1, D, D] (torch [out,in])   b_ref: [1, 1, D]
    # o_ref: [1, 1, H, tm, Dh]
    x = x_ref[0, 0]                                   # [tm, D]
    w = w_ref[0]                                      # [Dout, Din]
    proj = lax.dot_general(
        x, w, dimension_numbers=(((1,), (1,)), ((), ())),
        preferred_element_type=jnp.float32) + b_ref[0]            # [tm, Dout]
    for h in range(num_heads):                        # head split fused into the write
        o_ref[0, 0, h] = proj[:, h * head_dim:(h + 1) * head_dim]


# ------------------------------ flash attention -------------------------------------
def _flash_attn_kernel(q_ref, k_ref, v_ref, o_ref, m_sc, l_sc, acc_sc, *, scale):
    # q_ref: [1,1,H,tq,Dh], k_ref/v_ref: [1,1,H,tk,Dh], o_ref: [1,H,tq,Dh]
    j = pl.program_id(2)

    @pl.when(j == 0)
    def _():
        m_sc[...] = jnp.full_like(m_sc, -jnp.inf)
        l_sc[...] = jnp.zeros_like(l_sc)
        acc_sc[...] = jnp.zeros_like(acc_sc)

    q = q_ref[0, 0] * scale                           # fold scale into the small q tile
    k = k_ref[0, 0]
    v = v_ref[0, 0]

    # batched over heads; scores only for this kv tile: [H, tq, tk]
    s = jnp.einsum("hqd,hkd->hqk", q, k, preferred_element_type=jnp.float32)

    m_prev = m_sc[...]                                # [H, tq, 1]
    m_new = jnp.maximum(m_prev, s.max(axis=-1, keepdims=True))
    alpha = jnp.exp(m_prev - m_new)
    p = jnp.exp(s - m_new)
    l_sc[...] = alpha * l_sc[...] + p.sum(axis=-1, keepdims=True)
    acc_sc[...] = alpha * acc_sc[...] + jnp.einsum(
        "hqk,hkd->hqd", p.astype(v.dtype), v, preferred_element_type=jnp.float32)
    m_sc[...] = m_new

    @pl.when(j == pl.num_programs(2) - 1)
    def _():
        o_ref[0] = (acc_sc[...] * pl.reciprocal(l_sc[...], approx=True)).astype(o_ref.dtype)


# --------------------- output projection with fused head merge ----------------------
def _out_proj_kernel(a_ref, w_ref, b_ref, o_ref, *, num_heads, head_dim):
    # a_ref: [1, H, tq, Dh]   w_ref: [D, D] (torch [out,in])   b_ref: [1, D]
    # o_ref: [1, tq, D]  (lane-dense, D last)
    a = a_ref[0]                                      # [H, tq, Dh]
    w = w_ref[...]                                    # [Dout, Din]
    tq = a.shape[1]
    d_out = w.shape[0]
    acc = jnp.zeros((tq, d_out), jnp.float32)
    for h in range(num_heads):
        w_h = w[:, h * head_dim:(h + 1) * head_dim]   # [Dout, Dh]
        acc = acc + lax.dot_general(
            a[h], w_h, dimension_numbers=(((1,), (1,)), ((), ())),
            preferred_element_type=jnp.float32)
    o_ref[0] = acc + b_ref[...]


# ------------------------------------ forward ----------------------------------------
def multi_head_attention(q, k, v, params, num_heads):
    """Mirrors MultiHeadAttention.forward with past=None, mask=None."""
    # TODO(synk): `past` kv-cache concat and the additive `mask` (-1e5) path are not
    # exercised in this forward (both None); mask would be one extra additive input
    # to the flash kernel, `past` a larger Tk on the k/v side.
    assert q.shape == k.shape == v.shape, "fused QKV path assumes matching q/k/v shapes"
    B, T, D = q.shape
    Dh = D // num_heads
    H = num_heads

    xs = jnp.stack([q, k, v])                                        # [3, B, T, D]
    ws = jnp.stack([params["wq"], params["wk"], params["wv"]])       # [3, D, D] torch layout
    bs = jnp.stack([params["bq"], params["bk"], params["bv"]]).reshape(3, 1, D)

    # ---- fused Q/K/V projection, head-split output [3, B, H, T, Dh] ----
    tm = _pick_tile(T, 256)
    qkv = pl.pallas_call(
        functools.partial(_qkv_proj_kernel, num_heads=H, head_dim=Dh),
        out_shape=jax.ShapeDtypeStruct((3, B, H, T, Dh), jnp.float32),
        grid=(3, B, T // tm),
        in_specs=[
            pl.BlockSpec((1, 1, tm, D), lambda s, b, m: (s, b, m, 0)),
            pl.BlockSpec((1, D, D), lambda s, b, m: (s, 0, 0)),
            pl.BlockSpec((1, 1, D), lambda s, b, m: (s, 0, 0)),
        ],
        out_specs=pl.BlockSpec((1, 1, H, tm, Dh), lambda s, b, m: (s, b, 0, m, 0)),
        compiler_params=pltpu.CompilerParams(
            dimension_semantics=("parallel", "parallel", "parallel"),
            vmem_limit_bytes=_VMEM_LIMIT),
    )(xs, ws, bs)

    # ---- flash attention over (batch, q-tile, kv-tile), all heads per step ----
    tq = _pick_tile(T, 256)
    tk = _pick_tile(T, 512)
    scale = 1.0 / math.sqrt(Dh)
    q_spec = pl.BlockSpec((1, 1, H, tq, Dh), lambda b, i, j: (0, b, 0, i, 0))
    k_spec = pl.BlockSpec((1, 1, H, tk, Dh), lambda b, i, j: (1, b, 0, j, 0))
    v_spec = pl.BlockSpec((1, 1, H, tk, Dh), lambda b, i, j: (2, b, 0, j, 0))
    attn = pl.pallas_call(
        functools.partial(_flash_attn_kernel, scale=scale),
        out_shape=jax.ShapeDtypeStruct((B, H, T, Dh), jnp.float32),
        grid=(B, T // tq, T // tk),
        in_specs=[q_spec, k_spec, v_spec],
        out_specs=pl.BlockSpec((1, H, tq, Dh), lambda b, i, j: (b, 0, i, 0)),
        scratch_shapes=[
            pltpu.VMEM((H, tq, 1), jnp.float32),    # m
            pltpu.VMEM((H, tq, 1), jnp.float32),    # l
            pltpu.VMEM((H, tq, Dh), jnp.float32),   # acc
        ],
        compiler_params=pltpu.CompilerParams(
            dimension_semantics=("parallel", "parallel", "arbitrary"),
            vmem_limit_bytes=_VMEM_LIMIT),
    )(qkv, qkv, qkv)

    # ---- output projection, head merge fused, lane-dense [B, T, D] output ----
    out = pl.pallas_call(
        functools.partial(_out_proj_kernel, num_heads=H, head_dim=Dh),
        out_shape=jax.ShapeDtypeStruct((B, T, D), jnp.float32),
        grid=(B, T // tq),
        in_specs=[
            pl.BlockSpec((1, H, tq, Dh), lambda b, i: (b, 0, i, 0)),
            pl.BlockSpec((D, D), lambda b, i: (0, 0)),
            pl.BlockSpec((1, D), lambda b, i: (0, 0)),
        ],
        out_specs=pl.BlockSpec((1, tq, D), lambda b, i: (b, i, 0)),
        compiler_params=pltpu.CompilerParams(
            dimension_semantics=("parallel", "parallel"),
            vmem_limit_bytes=_VMEM_LIMIT),
    )(attn, params["wo"], params["bo"].reshape(1, D))

    k_cache = qkv[1]    # [B, H, T, Dh], matches the module's returned k
    v_cache = qkv[2]
    return out, (k_cache, v_cache)


# ------------------------------------ reference ---------------------------------------
def reference(q, k, v, params, num_heads):
    B, Tq, D = q.shape
    Tk = k.shape[1]
    Dh = D // num_heads
    qp = q @ params["wq"].T + params["bq"]
    kp = k @ params["wk"].T + params["bk"]
    vp = v @ params["wv"].T + params["bv"]
    qh = qp.reshape(B, Tq, num_heads, Dh).transpose(0, 2, 1, 3)
    kh = kp.reshape(B, Tk, num_heads, Dh).transpose(0, 2, 1, 3)
    vh = vp.reshape(B, Tk, num_heads, Dh).transpose(0, 2, 1, 3)
    s = jnp.einsum("bhqd,bhkd->bhqk", qh, kh) / math.sqrt(Dh)
    p = jax.nn.softmax(s, axis=-1)
    oh = jnp.einsum("bhqk,bhkd->bhqd", p, vh)
    o = oh.transpose(0, 2, 1, 3).reshape(B, Tq, D)
    return o @ params["wo"].T + params["bo"], (kh, vh)


if __name__ == "__main__":
    B, T, D, H = 2, 8, 32, 4

    key = jax.random.PRNGKey(0)
    keys = jax.random.split(key, 12)
    init = lambda kk, shape: (0.02 * jax.random.normal(kk, shape)).astype(jnp.float32)

    params = {
        "wq": init(keys[0], (D, D)), "bq": init(keys[1], (D,)),
        "wk": init(keys[2], (D, D)), "bk": init(keys[3], (D,)),
        "wv": init(keys[4], (D, D)), "bv": init(keys[5], (D,)),
        "wo": init(keys[6], (D, D)), "bo": init(keys[7], (D,)),
    }
    q = jax.random.normal(keys[8], (B, T, D), dtype=jnp.float32)
    k = jax.random.normal(keys[9], (B, T, D), dtype=jnp.float32)
    v = jax.random.normal(keys[10], (B, T, D), dtype=jnp.float32)

    out, (k_cache, v_cache) = multi_head_attention(q, k, v, params, H)
    jax.block_until_ready(out)
    jax.block_until_ready(k_cache)
    jax.block_until_ready(v_cache)

    ref_out, (ref_k, ref_v) = reference(q, k, v, params, H)
    assert out.shape == (B, T, D)
    assert k_cache.shape == (B, H, T, D // H)
    # output tolerance is slightly loose because of pl.reciprocal(approx=True)
    assert jnp.allclose(out, ref_out, atol=1e-3, rtol=1e-3)
    assert jnp.allclose(k_cache, ref_k, atol=1e-5, rtol=1e-5)
    assert jnp.allclose(v_cache, ref_v, atol=1e-5, rtol=1e-5)

    print("KERNEL_OK")
</pallas_src>

<mosaic_0001>
module attributes {stable_mosaic.version = 11 : i64} {
  func.func @_qkv_proj_kernel(%arg0: i32, %arg1: i32, %arg2: i32, %arg3: memref<1x1x8x32xf32, #tpu.memory_space<vmem>>, %arg4: memref<1x32x32xf32, #tpu.memory_space<vmem>>, %arg5: memref<1x1x32xf32, #tpu.memory_space<vmem>>, %arg6: memref<1x1x4x8x8xf32, #tpu.memory_space<vmem>>) attributes {dimension_semantics = [#tpu.dimension_semantics<parallel>, #tpu.dimension_semantics<parallel>, #tpu.dimension_semantics<parallel>], iteration_bounds = array<i64: 3, 2, 1>, scalar_prefetch = 0 : i64, scratch_operands = 0 : i64, tpu.core_type = #tpu.core_type<tc>, window_params = [{transform_indices = @transform_0, window_bounds = array<i64: 1, 1, 8, 32>}, {transform_indices = @transform_1, window_bounds = array<i64: 1, 32, 32>}, {transform_indices = @transform_2, window_bounds = array<i64: 1, 1, 32>}, {transform_indices = @transform_3, window_bounds = array<i64: 1, 1, 4, 8, 8>}]} {
    %c0 = arith.constant 0 : index
    %c0_0 = arith.constant 0 : index
    %c0_1 = arith.constant 0 : index
    %c0_2 = arith.constant 0 : index
    %0 = vector.load %arg3[%c0, %c0_0, %c0_1, %c0_2] : memref<1x1x8x32xf32, #tpu.memory_space<vmem>>, vector<1x1x8x32xf32>
    %1 = vector.shape_cast %0 : vector<1x1x8x32xf32> to vector<8x32xf32>
    %c0_3 = arith.constant 0 : index
    %c0_4 = arith.constant 0 : index
    %c0_5 = arith.constant 0 : index
    %2 = vector.load %arg4[%c0_3, %c0_4, %c0_5] : memref<1x32x32xf32, #tpu.memory_space<vmem>>, vector<1x32x32xf32>
    %3 = vector.shape_cast %2 : vector<1x32x32xf32> to vector<32x32xf32>
    %cst = arith.constant dense<0.000000e+00> : vector<8x32xf32>
    %4 = tpu.matmul %1, %3, %cst {dimension_numbers = #tpu.dot_dimension_numbers<[1], [1], [0], [0], [0, 0, 1, 0], [], []>} : vector<8x32xf32>, vector<32x32xf32>, vector<8x32xf32> -> vector<8x32xf32>
    %c0_6 = arith.constant 0 : index
    %c0_7 = arith.constant 0 : index
    %c0_8 = arith.constant 0 : index
    %5 = vector.load %arg5[%c0_6, %c0_7, %c0_8] : memref<1x1x32xf32, #tpu.memory_space<vmem>>, vector<1x1x32xf32>
    %6 = vector.shape_cast %5 : vector<1x1x32xf32> to vector<1x32xf32>
    %7 = vector.broadcast %6 : vector<1x32xf32> to vector<8x32xf32>
    %8 = arith.addf %4, %7 : vector<8x32xf32>
    %9 = vector.extract_strided_slice %8 {offsets = [0, 0], sizes = [8, 8], strides = [1, 1]} : vector<8x32xf32> to vector<8x8xf32>
    %c0_9 = arith.constant 0 : index
    %c0_10 = arith.constant 0 : index
    %c0_11 = arith.constant 0 : index
    %c0_12 = arith.constant 0 : index
    %c0_13 = arith.constant 0 : index
    %10 = vector.load %arg6[%c0_9, %c0_10, %c0_11, %c0_12, %c0_13] : memref<1x1x4x8x8xf32, #tpu.memory_space<vmem>>, vector<1x1x1x8x8xf32>
    %11 = vector.shape_cast %10 : vector<1x1x1x8x8xf32> to vector<8x8xf32>
    %12 = vector.shape_cast %9 : vector<8x8xf32> to vector<1x1x1x8x8xf32>
    tpu.vector_store %arg6[%c0_9, %c0_10, %c0_11, %c0_12, %c0_13], %12 {strides = array<i32>} : memref<1x1x4x8x8xf32, #tpu.memory_space<vmem>>, vector<1x1x1x8x8xf32>,
    %13 = vector.extract_strided_slice %8 {offsets = [0, 8], sizes = [8, 8], strides = [1, 1]} : vector<8x32xf32> to vector<8x8xf32>
    %c0_14 = arith.constant 0 : index
    %c0_15 = arith.constant 0 : index
    %c1 = arith.constant 1 : index
    %c0_16 = arith.constant 0 : index
    %c0_17 = arith.constant 0 : index
    %14 = vector.load %arg6[%c0_14, %c0_15, %c1, %c0_16, %c0_17] : memref<1x1x4x8x8xf32, #tpu.memory_space<vmem>>, vector<1x1x1x8x8xf32>
    %15 = vector.shape_cast %14 : vector<1x1x1x8x8xf32> to vector<8x8xf32>
    %16 = vector.shape_cast %13 : vector<8x8xf32> to vector<1x1x1x8x8xf32>
    tpu.vector_store %arg6[%c0_14, %c0_15, %c1, %c0_16, %c0_17], %16 {strides = array<i32>} : memref<1x1x4x8x8xf32, #tpu.memory_space<vmem>>, vector<1x1x1x8x8xf32>,
    %17 = vector.extract_strided_slice %8 {offsets = [0, 16], sizes = [8, 8], strides = [1, 1]} : vector<8x32xf32> to vector<8x8xf32>
    %c0_18 = arith.constant 0 : index
    %c0_19 = arith.constant 0 : index
    %c2 = arith.constant 2 : index
    %c0_20 = arith.constant 0 : index
    %c0_21 = arith.constant 0 : index
    %18 = vector.load %arg6[%c0_18, %c0_19, %c2, %c0_20, %c0_21] : memref<1x1x4x8x8xf32, #tpu.memory_space<vmem>>, vector<1x1x1x8x8xf32>
    %19 = vector.shape_cast %18 : vector<1x1x1x8x8xf32> to vector<8x8xf32>
    %20 = vector.shape_cast %17 : vector<8x8xf32> to vector<1x1x1x8x8xf32>
    tpu.vector_store %arg6[%c0_18, %c0_19, %c2, %c0_20, %c0_21], %20 {strides = array<i32>} : memref<1x1x4x8x8xf32, #tpu.memory_space<vmem>>, vector<1x1x1x8x8xf32>,
    %21 = vector.extract_strided_slice %8 {offsets = [0, 24], sizes = [8, 8], strides = [1, 1]} : vector<8x32xf32> to vector<8x8xf32>
    %c0_22 = arith.constant 0 : index
    %c0_23 = arith.constant 0 : index
    %c3 = arith.constant 3 : index
    %c0_24 = arith.constant 0 : index
    %c0_25 = arith.constant 0 : index
    %22 = vector.load %arg6[%c0_22, %c0_23, %c3, %c0_24, %c0_25] : memref<1x1x4x8x8xf32, #tpu.memory_space<vmem>>, vector<1x1x1x8x8xf32>
    %23 = vector.shape_cast %22 : vector<1x1x1x8x8xf32> to vector<8x8xf32>
    %24 = vector.shape_cast %21 : vector<8x8xf32> to vector<1x1x1x8x8xf32>
    tpu.vector_store %arg6[%c0_22, %c0_23, %c3, %c0_24, %c0_25], %24 {strides = array<i32>} : memref<1x1x4x8x8xf32, #tpu.memory_space<vmem>>, vector<1x1x1x8x8xf32>,
    return
  }
  func.func @transform_0(%arg0: i32, %arg1: i32, %arg2: i32) -> (i32, i32, i32, i32) {
    %c0_i32 = arith.constant 0 : i32
    %c0_i32_0 = arith.constant 0 : i32
    return %arg0, %arg1, %arg2, %c0_i32 : i32, i32, i32, i32
  }
  func.func @transform_1(%arg0: i32, %arg1: i32, %arg2: i32) -> (i32, i32, i32) {
    %c0_i32 = arith.constant 0 : i32
    %c0_i32_0 = arith.constant 0 : i32
    %c0_i32_1 = arith.constant 0 : i32
    return %arg0, %c0_i32, %c0_i32_0 : i32, i32, i32
  }
  func.func @transform_2(%arg0: i32, %arg1: i32, %arg2: i32) -> (i32, i32, i32) {
    %c0_i32 = arith.constant 0 : i32
    %c0_i32_0 = arith.constant 0 : i32
    %c0_i32_1 = arith.constant 0 : i32
    return %arg0, %c0_i32, %c0_i32_0 : i32, i32, i32
  }
  func.func @transform_3(%arg0: i32, %arg1: i32, %arg2: i32) -> (i32, i32, i32, i32, i32) {
    %c0_i32 = arith.constant 0 : i32
    %c0_i32_0 = arith.constant 0 : i32
    %c0_i32_1 = arith.constant 0 : i32
    return %arg0, %arg1, %c0_i32, %arg2, %c0_i32_0 : i32, i32, i32, i32, i32
  }
}

</mosaic_0001>

<llo_original>
// kernel: tpu_custom_call.1
$region0: #{tpu_custom_call.1}
  #allocation0 [shape = 'u32[]', space=smem, size = 0x4, offset = 0x4, fixed_abs, tag = 'smem constant byte address 0x4 - core index']
  #allocation1 [shape = 'u32[144,128]{1,0:T(1,128)}', space=vmem, size = 0x12000, scoped, tag = 'internal scratch']
  %s0 = inlined_call_operand.hbm [shape: f32[3,2,8,32], index: 0, kind: input, shape index: {}]
  %s1 = inlined_call_operand.hbm [shape: f32[3,32,32], index: 1, kind: input, shape index: {}]
  %s2 = inlined_call_operand.vmem [shape: f32[3,1,32], index: 2, kind: input, shape index: {}]
  %s3 = inlined_call_operand.hbm [shape: f32[3,2,4,8,8], index: 3, kind: output, shape index: {}]
  %s4 = sld [smem:[#allocation0]]
  $region53: #{tpu_custom_call.1} parent=0
    _
  %s6 = ssub.s32 1, %s4
  %s7 = scalar_select 0, %s6, %s4
  $region1: #{tpu_custom_call.1} parent=0
    #allocation2 [shape = 'u8[8192]{0}', space=vmem, size = 0x2000, scoped, tag = 'input window, operand 0']
    #allocation3 [shape = 's32[2]{0}', space=sflag, size = 0x8, scoped, tag = 'scoped memory for tpu_custom_call.1']
    #allocation4 [shape = 's32[2]{0}', space=sflag, size = 0x8, scoped, tag = 'scoped memory for tpu_custom_call.1']
    #allocation5 [shape = 'u8[32768]{0}', space=vmem, size = 0x8000, scoped, tag = 'input window, operand 1']
    #allocation6 [shape = 's32[2]{0}', space=sflag, size = 0x8, scoped, tag = 'scoped memory for tpu_custom_call.1']
    #allocation7 [shape = 'u8[32768]{0}', space=vmem, size = 0x8000, scoped, tag = 'output window, operand 0']
    %8 = vsyncpa [#allocation3], 0
    %s9 = scalar_lea.sflag [#allocation3], 1
    %10 = vsyncpa %s9, 0
    %11 = vsyncpa [#allocation6], 0
    %s12 = scalar_lea.sflag [#allocation6], 1
    %13 = vsyncpa %s12, 0
    %14 = vsyncpa [#allocation4], 0
    %s15 = scalar_lea.sflag [#allocation4], 1
    %16 = vsyncpa %s15, 0
    loop: start=0, step=1, limit=8
    $region2: #{tpu_custom_call.1} parent=1 // loop_pre_header
      _
    $region3: #{tpu_custom_call.1} parent=1 // loop_header
      %s18 = sphi 0, %s22
      %p19 = scmp.ge.s32.totalorder %s18, 8
      %s25 = sphi 0, %s44
      %s26 = sphi 0, %s40
      %s27 = sphi 0, %s36
      %s28 = sphi 0, %s25
      %s29 = sphi 0, %s26
      %s30 = sphi 0, %s27
      %s31 = sphi 0, %s28
      %s32 = sphi 0, %s29
      %s33 = sphi 0, %s30
      %s51 = sphi 0, %s53
      %s54 = sphi 0, %s51
      %s55 = sphi 0, %s54
      %s71 = sphi 0, %s55
      %s77 = sphi 0, %s79
      %s80 = sphi 0, %s77
      %s81 = sphi 0, %s80
      %s97 = sphi 0, %s81
      %s103 = sphi 0, %s105
      %s106 = sphi 0, %s103
      %s107 = sphi 0, %s106
      %s123 = sphi 0, %s107
      %s133 = sphi 0, %s135
      %s136 = sphi 0, %s133
      %s137 = sphi 0, %s136
      %s153 = sphi 0, %s137
    $region4: #{tpu_custom_call.1} parent=1 // loop_header_branch
      %21 = sbr.rel (%p19) target = $region8
    $region5: #{tpu_custom_call.1} parent=1 // loop_body
      %s23 = ssub.s32 %s18, 1
      %s24 = ssub.s32 %s18, 2
      %s34 = sadd.s32 1, %s27
      %p35 = scmp.ge.s32.totalorder %s34, 1
      %s36 = scalar_select %p35, 0, %s34
      %s37 = sadd.s32 1, %s26
      %s38 = scalar_select %p35, %s37, %s26
      %p39 = scmp.ge.s32.totalorder %s38, 2
      %s40 = scalar_select %p39, 0, %s38
      %s41 = sadd.s32 1, %s25
      %s42 = scalar_select %p39, %s41, %s25
      %p43 = scmp.ge.s32.totalorder %s42, 3
      %s44 = scalar_select %p43, 0, %s42
      %s45 = ssub.s32 %s25, %s44
      %s46 = ssub.s32 %s26, %s40
      %s47 = sor.u32 %s45, %s46
      %s48 = ssub.s32 %s27, %s36
      %s49 = sor.u32 %s47, %s48
      %p50 = scmp.eq.s32.totalorder %s49, 0
      %s52 = sadd.s32 %s51, 1
      %s53 = scalar_select %p50, %s51, %s52
      %p56 = pneg %p50
      %p57 = scmp.eq.s32.totalorder %s18, 5
      %p58 = por %p56, %p57
      %p59 = scmp.ne.s32.totalorder %s51, %s54
      %p60 = scmp.eq.s32.totalorder %s18, 0
      %p61 = por %p59, %p60
      %p62 = scmp.ne.s32.totalorder %s51, %s54
      %p63 = scmp.eq.s32.totalorder %s23, 5
      %p64 = por %p62, %p63
      %p65 = scmp.ne.s32.totalorder %s54, %s55
      %p66 = scmp.eq.s32.totalorder %s23, 0
      %p67 = por %p65, %p66
      %p68 = scmp.ne.s32.totalorder %s54, %s55
      %p69 = scmp.eq.s32.totalorder %s24, 5
      %p70 = por %p68, %p69
      %p72 = scmp.ne.s32.totalorder %s55, %s71
      %p73 = scmp.eq.s32.totalorder %s24, 0
      %p74 = por %p72, %p73
      %s75 = ssub.s32 %s25, %s44
      %p76 = scmp.eq.s32.totalorder %s75, 0
      %s78 = sadd.s32 %s77, 1
      %s79 = scalar_select %p76, %s77, %s78
      %p82 = pneg %p76
      %p83 = scmp.eq.s32.totalorder %s18, 5
      %p84 = por %p82, %p83
      %p85 = scmp.ne.s32.totalorder %s77, %s80
      %p86 = scmp.eq.s32.totalorder %s18, 0
      %p87 = por %p85, %p86
      %p88 = scmp.ne.s32.totalorder %s77, %s80
      %p89 = scmp.eq.s32.totalorder %s23, 5
      %p90 = por %p88, %p89
      %p91 = scmp.ne.s32.totalorder %s80, %s81
      %p92 = scmp.eq.s32.totalorder %s23, 0
      %p93 = por %p91, %p92
      %p94 = scmp.ne.s32.totalorder %s80, %s81
      %p95 = scmp.eq.s32.totalorder %s24, 5
      %p96 = por %p94, %p95
      %p98 = scmp.ne.s32.totalorder %s81, %s97
      %p99 = scmp.eq.s32.totalorder %s24, 0
      %p100 = por %p98, %p99
      %s101 = ssub.s32 %s25, %s44
      %p102 = scmp.eq.s32.totalorder %s101, 0
      %s104 = sadd.s32 %s103, 1
      %s105 = scalar_select %p102, %s103, %s104
      %p108 = pneg %p102
      %p109 = scmp.eq.s32.totalorder %s18, 5
      %p110 = por %p108, %p109
      %p111 = scmp.ne.s32.totalorder %s103, %s106
      %p112 = scmp.eq.s32.totalorder %s18, 0
      %p113 = por %p111, %p112
      %p114 = scmp.ne.s32.totalorder %s103, %s106
      %p115 = scmp.eq.s32.totalorder %s23, 5
      %p116 = por %p114, %p115
      %p117 = scmp.ne.s32.totalorder %s106, %s107
      %p118 = scmp.eq.s32.totalorder %s23, 0
      %p119 = por %p117, %p118
      %p120 = scmp.ne.s32.totalorder %s106, %s107
      %p121 = scmp.eq.s32.totalorder %s24, 5
      %p122 = por %p120, %p121
      %p124 = scmp.ne.s32.totalorder %s107, %s123
      %p125 = scmp.eq.s32.totalorder %s24, 0
      %p126 = por %p124, %p125
      %s127 = ssub.s32 %s25, %s44
      %s128 = ssub.s32 %s26, %s40
      %s129 = sor.u32 %s127, %s128
      %s130 = ssub.s32 %s27, %s36
      %s131 = sor.u32 %s129, %s130
      %p132 = scmp.eq.s32.totalorder %s131, 0
      %s134 = sadd.s32 %s133, 1
      %s135 = scalar_select %p132, %s133, %s134
      %p138 = pneg %p132
      %p139 = scmp.eq.s32.totalorder %s18, 5
      %p140 = por %p138, %p139
      %p141 = scmp.ne.s32.totalorder %s133, %s136
      %p142 = scmp.eq.s32.totalorder %s18, 0
      %p143 = por %p141, %p142
      %p144 = scmp.ne.s32.totalorder %s133, %s136
      %p145 = scmp.eq.s32.totalorder %s23, 5
      %p146 = por %p144, %p145
      %p147 = scmp.ne.s32.totalorder %s136, %s137
      %p148 = scmp.eq.s32.totalorder %s23, 0
      %p149 = por %p147, %p148
      %p150 = scmp.ne.s32.totalorder %s136, %s137
      %p151 = scmp.eq.s32.totalorder %s24, 5
      %p152 = por %p150, %p151
      %p154 = scmp.ne.s32.totalorder %s137, %s153
      %p155 = scmp.eq.s32.totalorder %s24, 0
      %p156 = por %p154, %p155
      %p157 = scmp.le.s32.totalorder 1, %s18
      %p158 = scmp.lt.s32.totalorder %s18, 7
      %p159 = pnand %p157, %p158
      %p160 = pneg %p159
      // Predicated region
      $region9: #{tpu_custom_call.1} parent=5 // pred_check
        _
      $region10: #{tpu_custom_call.1} parent=5 // pred_check_branch
        %162 = sbr.rel (%p159) target = $region12
      $region11: #{tpu_custom_call.1} parent=5 // pred_region
        %s163 = ssub.s32 %s18, 1
      $region12: #{tpu_custom_call.1} parent=5 // pred_fallthru
        _
      %p164 = scmp.lt.s32.totalorder %s18, 6
      // Predicated region
      $region13: #{tpu_custom_call.1} parent=5 // pred_check
        %p165 = pneg %p164
      $region14: #{tpu_custom_call.1} parent=5 // pred_check_branch
        %167 = sbr.rel (%p165) target = $region16
      $region15: #{tpu_custom_call.1} parent=5 // pred_region
        // Predicated region
        $region17: #{tpu_custom_call.1} parent=15 // pred_check
          %p168 = pneg %p61
        $region18: #{tpu_custom_call.1} parent=15 // pred_check_branch
          %170 = sbr.rel (%p168) target = $region20
        $region19: #{tpu_custom_call.1} parent=15 // pred_region
          %s171 = sand.u32 %s51, 1
          %s172 = scalar_lea.sflag [#allocation3], %s171
          %s173 = sand.u32 %s51, 1
          %s174 = smul.addr %s173, 8
          %s175 = scalar_lea.vmem [#allocation2], %s174
          %s177 = ssub.s32 128, 128
          %178 = vsyncadd %s172, %s177
          %s179 = sadd.s32 %s27, %s26
          %s180 = smul.addr %s25, 2
          %s181 = sadd.s32 %s179, %s180
          %s182 = smul.addr %s181, 128
          %s183 = scalar_lea.hbm %s0, %s182
          %s185 = sshll.u32 %s175, 4
          %s186 = int_to_ptr.vmem [resolvable:$true] %s185
          %188 = dma.hbm_to_vmem [thread:$0]  %s183, 128, %s186, %s172
        $region20: #{tpu_custom_call.1} parent=15 // pred_fallthru
          _
        // Predicated region
        $region21: #{tpu_custom_call.1} parent=15 // pred_check
          %p189 = pneg %p87
        $region22: #{tpu_custom_call.1} parent=15 // pred_check_branch
          %191 = sbr.rel (%p189) target = $region24
        $region23: #{tpu_custom_call.1} parent=15 // pred_region
          %s192 = sand.u32 %s77, 1
          %s193 = scalar_lea.sflag [#allocation6], %s192
          %s194 = sand.u32 %s77, 1
          %s195 = smul.addr %s194, 32
          %s196 = scalar_lea.vmem [#allocation5], %s195
          %s198 = ssub.s32 512, 512
          %199 = vsyncadd %s193, %s198
          %s200 = smul.addr %s25, 4
          %s201 = smul.addr %s200, 128
          %s202 = scalar_lea.hbm %s1, %s201
          %s203 = sshll.u32 %s196, 4
          %s204 = int_to_ptr.vmem [resolvable:$true] %s203
          %209 = dma.hbm_to_vmem [thread:$0]  %s202, 512, %s204, %s193, 128, 128, 8
        $region24: #{tpu_custom_call.1} parent=15 // pred_fallthru
          _
        // Predicated region
        $region25: #{tpu_custom_call.1} parent=15 // pred_check
          %p210 = pneg %p113
        $region26: #{tpu_custom_call.1} parent=15 // pred_check_branch
          %212 = sbr.rel (%p210) target = $region28
        $region27: #{tpu_custom_call.1} parent=15 // pred_region
          %p213 = scmp.lt.s32.totalorder %s25, 2
          %s214 = scalar_select %p213, %s25, 2
          %s215 = scalar_lea.vmem %s2, %s214
        $region28: #{tpu_custom_call.1} parent=15 // pred_fallthru
          _
      $region16: #{tpu_custom_call.1} parent=5 // pred_fallthru
        _
      %p216 = scmp.le.s32.totalorder 1, %s18
      %p217 = scmp.lt.s32.totalorder %s18, 7
      %p218 = pnand %p216, %p217
      %p219 = pneg %p218
      // Predicated region
      $region29: #{tpu_custom_call.1} parent=5 // pred_check
        _
      $region30: #{tpu_custom_call.1} parent=5 // pred_check_branch
        %221 = sbr.rel (%p218) target = $region32
      $region31: #{tpu_custom_call.1} parent=5 // pred_region
        %s222 = ssub.s32 %s18, 1
        %s223 = sand.u32 %s54, 1
        %s224 = scalar_lea.sflag [#allocation3], %s223
        %s225 = sand.u32 %s54, 1
        %s226 = smul.addr %s225, 8
        %s227 = scalar_lea.vmem [#allocation2], %s226
        // Predicated region
        $region33: #{tpu_custom_call.1} parent=31 // pred_check
          %p228 = pneg %p67
        $region34: #{tpu_custom_call.1} parent=31 // pred_check_branch
          %230 = sbr.rel (%p228) target = $region36
        $region35: #{tpu_custom_call.1} parent=31 // pred_region
          %231 = dma.done %s224, 128
        $region36: #{tpu_custom_call.1} parent=31 // pred_fallthru
          _
        %s232 = sand.u32 %s80, 1
        %s233 = scalar_lea.sflag [#allocation6], %s232
        %s234 = sand.u32 %s80, 1
        %s235 = smul.addr %s234, 32
        %s236 = scalar_lea.vmem [#allocation5], %s235
        // Predicated region
        $region37: #{tpu_custom_call.1} parent=31 // pred_check
          %p237 = pneg %p93
        $region38: #{tpu_custom_call.1} parent=31 // pred_check_branch
          %239 = sbr.rel (%p237) target = $region40
        $region39: #{tpu_custom_call.1} parent=31 // pred_region
          %240 = dma.done %s233, 512
        $region40: #{tpu_custom_call.1} parent=31 // pred_fallthru
          _
        %s241 = sand.u32 %s54, 1
        %s242 = scalar_lea.sflag [#allocation3], %s241
        %s243 = sand.u32 %s54, 1
        %s244 = smul.addr %s243, 8
        %s245 = scalar_lea.vmem [#allocation2], %s244
        %p246 = pneg %p67
        %p247 = pneg %p64
        %s248 = sand.u32 %s80, 1
        %s249 = scalar_lea.sflag [#allocation6], %s248
        %s250 = sand.u32 %s80, 1
        %s251 = smul.addr %s250, 32
        %s252 = scalar_lea.vmem [#allocation5], %s251
        %p253 = pneg %p93
        %p254 = pneg %p90
        %p255 = scmp.lt.s32.totalorder %s28, 2
        %s256 = scalar_select %p255, %s28, 2
        %s257 = scalar_lea.vmem %s2, %s256
        %p258 = pneg %p119
        %p259 = pneg %p116
        %p260 = pneg %p149
        %p261 = pneg %p146
        %s262 = sand.u32 %s136, 1
        %s263 = scalar_lea.sflag [#allocation4], %s262
        %s264 = sand.u32 %s136, 1
        %s265 = smul.addr %s264, 32
        %s266 = scalar_lea.vmem [#allocation7], %s265
        %p267 = scmp.lt.s32.totalorder %s28, 2
        %s268 = scalar_select %p267, %s28, 2
        %s269 = scalar_lea.vmem %s2, %s268
        %v270 = vld [vmem:[%s227] sm:$0xff]
        %v271 = vld [vmem:[%s236] sm:$0xff]
        %v272 = vld [vmem:[%s236 + $0x8] sm:$0xff]
        %v273 = vld [vmem:[%s236 + $0x10] sm:$0xff]
        %v274 = vld [vmem:[%s236 + $0x18] sm:$0xff]
        %v275 = vld [vmem:[%s269] sm:$0x1]
        %v277 = vlaneseq
        %v278 = vshrl.u32 %v277, 7
        %v279 = vsub.s32 0, %v278
        %v280 = vrot.slane %v275, %v279
        %vm282 = vcmask 261120
        %v284 = vsel %vm282, %v270, 0
        %v287 = vsel %vm282, %v271, 0
        %v290 = vsel %vm282, %v272, 0
        %v293 = vsel %vm282, %v273, 0
        %v296 = vsel %vm282, %v274, 0
        %298 = vmatprep.subr.mxu0 0.0
        %299 = vmatpush1.xpose.msra.mxu0 0.0
        %300 = vmatprep.subr.mxu0 0.0
        %301 = vmatpush1.xpose.msra.mxu0 0.0
        %302 = vmatprep.subr.mxu0 0.0
        %303 = vmatpush1.xpose.msra.mxu0 0.0
        %304 = vmatprep.subr.mxu0 0.0
        %305 = vmatpush1.xpose.msra.mxu0 0.0
        %306 = vmatprep.subr.mxu0 0.0
        %307 = vmatpush1.xpose.msra.mxu0 0.0
        %308 = vmatprep.subr.mxu0 0.0
        %309 = vmatpush1.xpose.msra.mxu0 0.0
        %310 = vmatprep.subr.mxu0 0.0
        %311 = vmatpush1.xpose.msra.mxu0 0.0
        %312 = vmatprep.subr.mxu0 0.0
        %313 = vmatpush1.xpose.msra.mxu0 0.0
        %314 = vmatprep.subr.mxu0 0.0
        %315 = vmatpush1.xpose.msra.mxu0 0.0
        %316 = vmatprep.subr.mxu0 0.0
        %317 = vmatpush1.xpose.msra.mxu0 0.0
        %318 = vmatprep.subr.mxu0 0.0
        %319 = vmatpush1.xpose.msra.mxu0 0.0
        %320 = vmatprep.subr.mxu0 0.0
        %321 = vmatpush1.xpose.msra.mxu0 0.0
        %322 = vmatprep.subr.mxu0 0.0
        %323 = vmatpush1.xpose.msra.mxu0 %v296
        %324 = vmatprep.subr.mxu0 0.0
        %325 = vmatpush1.xpose.msra.mxu0 %v293
        %326 = vmatprep.subr.mxu0 0.0
        %327 = vmatpush1.xpose.msra.mxu0 %v290
        %328 = vmatprep.subr.mxu0 0.0
        %329 = vmatpush1.xpose.msra.mxu0 %v287
        %330 = vmatprep.subr.mxu0 0.0
        %331 = vmatpush2.xpose.msra.mxu0 0.0
        %332 = vmatprep.subr.mxu0 0.0
        %333 = vmatpush2.xpose.msra.mxu0 0.0
        %334 = vmatprep.subr.mxu0 0.0
        %335 = vmatpush2.xpose.msra.mxu0 0.0
        %336 = vmatprep.subr.mxu0 0.0
        %337 = vmatpush2.xpose.msra.mxu0 0.0
        %338 = vmatprep.subr.mxu0 0.0
        %339 = vmatpush2.xpose.msra.mxu0 0.0
        %340 = vmatprep.subr.mxu0 0.0
        %341 = vmatpush2.xpose.msra.mxu0 0.0
        %342 = vmatprep.subr.mxu0 0.0
        %343 = vmatpush2.xpose.msra.mxu0 0.0
        %344 = vmatprep.subr.mxu0 0.0
        %345 = vmatpush2.xpose.msra.mxu0 0.0
        %346 = vmatprep.subr.mxu0 0.0
        %347 = vmatpush2.xpose.msra.mxu0 0.0
        %348 = vmatprep.subr.mxu0 0.0
        %349 = vmatpush2.xpose.msra.mxu0 0.0
        %350 = vmatprep.subr.mxu0 0.0
        %351 = vmatpush2.xpose.msra.mxu0 0.0
        %352 = vmatprep.subr.mxu0 0.0
        %353 = vmatpush2.xpose.msra.mxu0 0.0
        %354 = vmatprep.subr.mxu0 0.0
        %355 = vmatpush2.xpose.msra.mxu0 0.0
        %356 = vmatprep.subr.mxu0 0.0
        %357 = vmatpush2.xpose.msra.mxu0 0.0
        %358 = vmatprep.subr.mxu0 0.0
        %359 = vmatpush2.xpose.msra.mxu0 0.0
        %360 = vmatprep.subr.mxu0 0.0
        %361 = vmatpush2.xpose.msra.mxu0 0.0
        %362 = vmatprep.mubr.f32.mxu0 0.0
        %363 = vmatmul.mubr.f32.gmra.mxu0 %v284
        %v364 = vpop.f32.mrf.mxu0
        %v365 = vadd.f32 %v280, %v364
        %v366 = vpop.f32.mrf.mxu0
        %367 = vdwg.mxu0
        %vm368 = vcmask 64512
        %369 = vst.msk [vmem:[%s266] sm:$0xff] %vm368, %v365
        %371 = vrot.lane.b32.xlu0 %v365, 120
        %v372 = vpop.permute.xlu0 %371
        %s374 = scalar_lea.vmem %s266, 8 [#allocation7]
        %375 = vst.msk [vmem:[%s374] sm:$0xff] %vm368, %v372
        %376 = vrot.lane.b32.xlu0 %v365, 112
        %v377 = vpop.permute.xlu0 %376
        %s379 = scalar_lea.vmem %s266, 16 [#allocation7]
        %380 = vst.msk [vmem:[%s379] sm:$0xff] %vm368, %v377
        %381 = vrot.lane.b32.xlu0 %v365, 104
        %v382 = vpop.permute.xlu0 %381
        %s384 = scalar_lea.vmem %s266, 24 [#allocation7]
        %385 = vst.msk [vmem:[%s384] sm:$0xff] %vm368, %v382
        %s386 = sand.u32 %s136, 1
        %s387 = scalar_lea.sflag [#allocation4], %s386
        %s388 = sand.u32 %s136, 1
        %s389 = smul.addr %s388, 32
        %s390 = scalar_lea.vmem [#allocation7], %s389
        // Predicated region
        $region41: #{tpu_custom_call.1} parent=31 // pred_check
          %p391 = pneg %p146
        $region42: #{tpu_custom_call.1} parent=31 // pred_check_branch
          %393 = sbr.rel (%p391) target = $region44
        $region43: #{tpu_custom_call.1} parent=31 // pred_region
          %s395 = ssub.s32 512, 512
          %396 = vsyncadd %s387, %s395
          %s397 = smul.addr %s29, 4
          %s398 = sadd.s32 %s30, %s397
          %s399 = smul.addr %s28, 8
          %s400 = sadd.s32 %s398, %s399
          %s401 = smul.addr %s400, 128
          %s402 = scalar_lea.hbm %s3, %s401
          %s403 = sshll.u32 %s390, 4
          %s404 = int_to_ptr.vmem [resolvable:$true] %s403
          %409 = dma.vmem_to_hbm [thread:$0]  %s404, 512, %s402, %s387, 128, 128, 8
        $region44: #{tpu_custom_call.1} parent=31 // pred_fallthru
          _
      $region32: #{tpu_custom_call.1} parent=5 // pred_fallthru
        _
      %p410 = scmp.le.s32.totalorder 2, %s18
      // Predicated region
      $region45: #{tpu_custom_call.1} parent=5 // pred_check
        %p411 = pneg %p410
      $region46: #{tpu_custom_call.1} parent=5 // pred_check_branch
        %413 = sbr.rel (%p411) target = $region48
      $region47: #{tpu_custom_call.1} parent=5 // pred_region
        %s414 = ssub.s32 %s18, 2
        // Predicated region
        $region49: #{tpu_custom_call.1} parent=47 // pred_check
          %p415 = pneg %p152
        $region50: #{tpu_custom_call.1} parent=47 // pred_check_branch
          %417 = sbr.rel (%p415) target = $region52
        $region51: #{tpu_custom_call.1} parent=47 // pred_region
          %s418 = sand.u32 %s137, 1
          %s419 = scalar_lea.sflag [#allocation4], %s418
          %s420 = sand.u32 %s137, 1
          %s421 = smul.addr %s420, 32
          %s422 = scalar_lea.vmem [#allocation7], %s421
          %423 = dma.done %s419, 512
        $region52: #{tpu_custom_call.1} parent=47 // pred_fallthru
          _
      $region48: #{tpu_custom_call.1} parent=5 // pred_fallthru
        _
    $region6: #{tpu_custom_call.1} parent=1 // loop_footer
      %s22 = sadd.s32 1, %s18
    $region7: #{tpu_custom_call.1} parent=1 // loop_footer_branch
      %17 = sbr.rel target = $region3
    $region8: #{tpu_custom_call.1} parent=1 // loop_exit
      _
    %424 = vsyncpa [#allocation3], 1
    %s425 = scalar_lea.sflag [#allocation3], 1
    %426 = vsyncpa %s425, 1
    %427 = vsyncpa [#allocation6], 1
    %s428 = scalar_lea.sflag [#allocation6], 1
    %429 = vsyncpa %s428, 1
    %430 = vsyncpa [#allocation4], 1
    %s431 = scalar_lea.sflag [#allocation4], 1
    %432 = vsyncpa %s431, 1

</llo_original>
